<compile_context>
chip_gen: v7x
topology: tpu7x:2x2x1
jax: 0.10.0
libtpu: 0.0.40
codegen_flags: <defaults>
</compile_context>

<pallas_src>
import functools

import jax
import jax.numpy as jnp
from jax.experimental import pallas as pl
from jax.experimental.pallas import tpu as pltpu

LANE = 128
MAX_TILE_ROWS = 2048  # 2048*128*4B = 1 MiB per f32 input buffer (x2 double-buffered)


def _make_gan_loss_kernel(gan_type: str, param: float, needs_mask: bool,
                          remaining: int):
    """Per-tile kernel; all scalars are static and baked into the closure.

    param:     target label value (vanilla / lsgan) or sign (-1/+1, wgan-gp)
    remaining: number of valid elements in the LAST tile (static)
    """

    def kernel(x_ref, out_ref):
        x = x_ref[...].astype(jnp.float32)          # (tile_rows, LANE)

        if gan_type == 'lsgan':
            # MSELoss against constant target label.
            d = x - param if param != 0.0 else x
            e = d * d
        elif gan_type == 'vanilla':
            # BCEWithLogitsLoss, numerically stable:
            #   max(x,0) - x*t + log1p(exp(-|x|))
            e = jnp.maximum(x, 0.0) + jnp.log1p(jnp.exp(-jnp.abs(x)))
            if param != 0.0:
                e = e - x * param
        else:  # 'wgan-gp': loss = -mean(x) if real else mean(x)
            e = -x if param < 0.0 else x

        if needs_mask:
            # Only the last tile contains padding / out-of-bounds rows; the
            # boundary `remaining` is a static Python int, so this stays cheap
            # (two iotas + compare) and is skipped entirely when not needed.
            i = pl.program_id(0)
            last = pl.num_programs(0) - 1
            r = jax.lax.broadcasted_iota(jnp.int32, e.shape, 0)
            l = jax.lax.broadcasted_iota(jnp.int32, e.shape, 1)
            rel = r * LANE + l
            e = jnp.where(jnp.logical_or(i < last, rel < remaining), e, 0.0)

        # Per-lane partial sums for this tile; cross-lane reduction and the
        # division by n happen once in the wrapper.
        out_ref[...] = jnp.sum(e, axis=0, keepdims=True)

    return kernel


@functools.partial(jax.jit, static_argnames=('target_is_real', 'gan_type',
                                              'real_label_val', 'fake_label_val'))
def gan_loss_pallas(x, target_is_real, gan_type='lsgan',
                    real_label_val=1.0, fake_label_val=0.0):
    """Pallas equivalent of GANLoss(gan_type, ...).forward(x, target_is_real)."""
    gan_type = gan_type.lower()
    if gan_type not in ('vanilla', 'lsgan', 'wgan-gp'):
        raise NotImplementedError(f'GAN type [{gan_type}] is not found')

    if gan_type == 'wgan-gp':
        param = -1.0 if target_is_real else 1.0
    else:
        param = float(real_label_val) if target_is_real else float(fake_label_val)

    # Feed logits in their native dtype (bf16/f32); cast to f32 inside the
    # kernel after load.  Other dtypes fall back to an f32 cast here.
    if x.dtype not in (jnp.dtype(jnp.float32), jnp.dtype(jnp.bfloat16)):
        x = x.astype(jnp.float32)

    n = x.size                      # static under jit
    x_flat = x.reshape(-1)          # free (metadata-only) for contiguous input
    lane_pad = (-n) % LANE
    if lane_pad:
        # Only the ragged lane tail is padded; typical NCHW logit maps hit the
        # zero-copy path (n % 128 == 0) and skip this entirely.
        x_flat = jnp.pad(x_flat, (0, lane_pad))
    rows = (n + lane_pad) // LANE
    x2d = x_flat.reshape(rows, LANE)

    if rows <= MAX_TILE_ROWS:
        tile_rows, num_tiles = rows, 1          # block == full array (always legal)
    else:
        tile_rows = MAX_TILE_ROWS               # multiple of 8 and 16
        num_tiles = pl.cdiv(rows, MAX_TILE_ROWS)

    tile_elems = tile_rows * LANE
    remaining = n - (num_tiles - 1) * tile_elems   # valid elems in last tile
    needs_mask = remaining != tile_elems           # static

    kernel = _make_gan_loss_kernel(gan_type, param, needs_mask, remaining)

    cost = pl.CostEstimate(
        flops=6 * n,
        transcendentals=(2 * n if gan_type == 'vanilla' else 0),
        bytes_accessed=n * x2d.dtype.itemsize + num_tiles * LANE * 4,
    )

    partials = pl.pallas_call(
        kernel,
        out_shape=jax.ShapeDtypeStruct((1, num_tiles * LANE), jnp.float32),
        grid=(num_tiles,),
        in_specs=[pl.BlockSpec((tile_rows, LANE), lambda i: (i, 0))],
        out_specs=pl.BlockSpec((1, LANE), lambda i: (0, i)),
        compiler_params=pltpu.CompilerParams(
            dimension_semantics=("parallel",)),   # disjoint output blocks ->
        cost_estimate=cost,                       # v7x can split across 2 TCs
    )(x2d)

    return jnp.sum(partials) / jnp.float32(n)


def _gan_loss_ref(x, target_is_real, gan_type, real_label_val=1.0, fake_label_val=0.0):
    """Pure-JAX reference matching the PyTorch semantics."""
    x = x.astype(jnp.float32)
    if gan_type == 'wgan-gp':
        return -jnp.mean(x) if target_is_real else jnp.mean(x)
    t = real_label_val if target_is_real else fake_label_val
    if gan_type == 'lsgan':
        return jnp.mean((x - t) ** 2)
    # vanilla (BCE with logits)
    return jnp.mean(jnp.maximum(x, 0.0) - x * t + jnp.log1p(jnp.exp(-jnp.abs(x))))


if __name__ == "__main__":
    key = jax.random.PRNGKey(0)
    # Discriminator logits, NCHW like the PyTorch module would receive.
    x = jax.random.normal(key, (2, 4, 16, 16), dtype=jnp.float32)

    ok = True
    for gan_type in ('lsgan', 'vanilla', 'wgan-gp'):
        for target_is_real in (True, False):
            got = gan_loss_pallas(x, target_is_real, gan_type)
            jax.block_until_ready(got)
            want = _gan_loss_ref(x, target_is_real, gan_type)
            if not jnp.allclose(got, want, rtol=1e-5, atol=1e-5):
                ok = False
                print(f"MISMATCH {gan_type} real={target_is_real}: {got} vs {want}")

    # Extra coverage: ragged size (lane-pad + mask path) and a bf16 input big
    # enough to use more than one grid tile (ragged last block).
    key2, key3 = jax.random.split(key)
    x_ragged = jax.random.normal(key2, (3, 1, 37, 29), dtype=jnp.float32)    # n=3219
    x_big = jax.random.normal(key3, (2, 3, 256, 192), dtype=jnp.bfloat16)    # n=294912
    for xt, tol in ((x_ragged, 1e-5), (x_big, 1e-4)):
        for gan_type in ('lsgan', 'vanilla', 'wgan-gp'):
            got = gan_loss_pallas(xt, True, gan_type)
            jax.block_until_ready(got)
            want = _gan_loss_ref(xt, True, gan_type)
            if not jnp.allclose(got, want, rtol=tol, atol=tol):
                ok = False
                print(f"MISMATCH {gan_type} shape={xt.shape} dtype={xt.dtype}: "
                      f"{got} vs {want}")

    if ok:
        print("KERNEL_OK")
</pallas_src>

<mosaic_0001>
module attributes {stable_mosaic.version = 11 : i64} {
  func.func @kernel(%arg0: i32, %arg1: memref<16x128xf32, #tpu.memory_space<vmem>>, %arg2: memref<1x128xf32, #tpu.memory_space<vmem>>) attributes {dimension_semantics = [#tpu.dimension_semantics<parallel>], iteration_bounds = array<i64: 1>, scalar_prefetch = 0 : i64, scratch_operands = 0 : i64, tpu.core_type = #tpu.core_type<tc>, window_params = [{transform_indices = @transform_0, window_bounds = array<i64: 16, 128>}, {transform_indices = @transform_1, window_bounds = array<i64: 1, 128>}]} {
    %c0 = arith.constant 0 : index
    %c0_0 = arith.constant 0 : index
    %0 = vector.load %arg1[%c0, %c0_0] : memref<16x128xf32, #tpu.memory_space<vmem>>, vector<16x128xf32>
    %cst = arith.constant 1.000000e+00 : f32
    %1 = vector.broadcast %cst : f32 to vector<16x128xf32>
    %2 = arith.subf %0, %1 : vector<16x128xf32>
    %3 = arith.mulf %2, %2 : vector<16x128xf32>
    %cst_1 = arith.constant dense<0.000000e+00> : vector<128xf32>
    %4 = vector.multi_reduction <add>, %3, %cst_1 [0] : vector<16x128xf32> to vector<128xf32>
    %5 = vector.shape_cast %4 : vector<128xf32> to vector<1x128xf32>
    %c0_2 = arith.constant 0 : index
    %c0_3 = arith.constant 0 : index
    %6 = vector.load %arg2[%c0_2, %c0_3] : memref<1x128xf32, #tpu.memory_space<vmem>>, vector<1x128xf32>
    tpu.vector_store %arg2[%c0_2, %c0_3], %5 {strides = array<i32>} : memref<1x128xf32, #tpu.memory_space<vmem>>, vector<1x128xf32>,
    return
  }
  func.func @transform_0(%arg0: i32) -> (i32, i32) {
    %c0_i32 = arith.constant 0 : i32
    %c0_i32_0 = arith.constant 0 : i32
    return %arg0, %c0_i32 : i32, i32
  }
  func.func @transform_1(%arg0: i32) -> (i32, i32) {
    %c0_i32 = arith.constant 0 : i32
    %c0_i32_0 = arith.constant 0 : i32
    return %c0_i32, %arg0 : i32, i32
  }
}

</mosaic_0001>

<llo_original>
// kernel: gan_loss_pallas.1
$region0: #{gan_loss_pallas.1}
  #allocation0 [shape = 'u32[]', space=smem, size = 0x4, offset = 0x4, fixed_abs, tag = 'smem constant byte address 0x4 - core index']
  #allocation1 [shape = 'u32[144,128]{1,0:T(1,128)}', space=vmem, size = 0x12000, scoped, tag = 'internal scratch']
  %s0 = inlined_call_operand.vmem [shape: f32[16,128], index: 0, kind: input, shape index: {}]
  %s1 = inlined_call_operand.vmem [shape: f32[1,128], index: 1, kind: output, shape index: {}]
  %s2 = sld [smem:[#allocation0]]
  $region14: #{gan_loss_pallas.1} parent=0
    _
  %s4 = ssub.s32 1, %s2
  %s5 = scalar_select 0, %s4, %s2
  // Predicated region
  $region2: #{gan_loss_pallas.1} parent=0 // pred_check
    _
  $region3: #{gan_loss_pallas.1} parent=0 // pred_check_branch
    %7 = sbr.rel (0) target = $region5
  $region4: #{gan_loss_pallas.1} parent=0 // pred_region
    _
  $region5: #{gan_loss_pallas.1} parent=0 // pred_fallthru
    _
  %v8 = vld [vmem:[%s0] sm:$0xff]
  %v9 = vld [vmem:[%s0 + $0x8] sm:$0xff]
  %v10 = vsub.f32 %v8, 1.0
  %v11 = vsub.f32 %v9, 1.0
  %v12 = vmul.f32 %v10, %v10
  %v13 = vmul.f32 %v11, %v11
  %v14 = vadd.f32 %v12, %v13
  %v15 = vrot.slane %v14, 4
  %v16 = vadd.f32 %v14, %v15
  %v17 = vrot.slane %v16, 2
  %v18 = vadd.f32 %v16, %v17
  %v19 = vrot.slane %v18, 1
  %v20 = vadd.f32 %v18, %v19
  %21 = vst [vmem:[%s1] sm:$0x1] %v20
  // Predicated region
  $region6: #{gan_loss_pallas.1} parent=0 // pred_check
    _
  $region7: #{gan_loss_pallas.1} parent=0 // pred_check_branch
    %23 = sbr.rel (0) target = $region9
  $region8: #{gan_loss_pallas.1} parent=0 // pred_region
    _
  $region9: #{gan_loss_pallas.1} parent=0 // pred_fallthru
    _
  // Predicated region
  $region10: #{gan_loss_pallas.1} parent=0 // pred_check
    _
  $region11: #{gan_loss_pallas.1} parent=0 // pred_check_branch
    %25 = sbr.rel (0) target = $region13
  $region12: #{gan_loss_pallas.1} parent=0 // pred_region
    _
  $region13: #{gan_loss_pallas.1} parent=0 // pred_fallthru
    _

</llo_original>
